<compile_context>
chip_gen: v5e
topology: v5e:2x2
jax: 0.10.0
libtpu: 0.0.40
codegen_flags: <defaults>
</compile_context>

<pallas_src>
import numpy as np
import jax
import jax.numpy as jnp
from jax.experimental import pallas as pl
from jax.experimental.pallas import tpu as pltpu


# --------------------------- static weight matrix ----------------------------

def _build_weight_matrix(H, W, fh, fw, k, method):
    """A s.t.  [x_packed | up_halo | dn_halo] @ A  is the packed, interleaved
    upsampled output.

    x_packed row p holds input rows p*k .. p*k+k-1 of one feature map (k | H)
    as k contiguous W-wide column blocks.  Output column
    c = (j*fh + dh)*W*fw + ox corresponds to output pixel
    (row (p*k + j)*fh + dh, col ox), matching F.interpolate with
    mode='nearest' / mode='bilinear' (align_corners=False).

    Returns (A, need_halo).  When need_halo is False the LHS is just x_packed
    (A has k*W rows); otherwise A has (k+2)*W rows and the last two W-blocks
    weight the clamp-to-edge up / down halo rows.
    """
    Wout = W * fw
    ncol = k * fh * Wout

    # 1-D W-direction weights (PyTorch align_corners=False, clipped at 0).
    colw = np.zeros((W, Wout), dtype=np.float32)
    for ox in range(Wout):
        if method == "nearest":
            colw[ox // fw, ox] = 1.0
        else:
            s = max((ox + 0.5) / fw - 0.5, 0.0)
            i0 = min(int(np.floor(s)), W - 1)
            i1 = min(i0 + 1, W - 1)
            t = s - i0
            colw[i0, ox] += 1.0 - t
            colw[i1, ox] += t

    need_halo = (method != "nearest") and fh > 1
    nrow = (k + 2) * W if need_halo else k * W
    A = np.zeros((nrow, ncol), dtype=np.float32)
    UP, DN = k * W, (k + 1) * W                  # halo block column offsets

    for j in range(k):
        for dh in range(fh):
            c0 = (j * fh + dh) * Wout
            if method == "nearest":
                A[j * W:(j + 1) * W, c0:c0 + Wout] = colw
                continue
            t = (dh + 0.5) / fh - 0.5            # |t| < 0.5 -> only +/-1 source rows
            if t > 0.0:
                A[j * W:(j + 1) * W, c0:c0 + Wout] += (1.0 - t) * colw
                dst = DN if j == k - 1 else (j + 1) * W
                A[dst:dst + W, c0:c0 + Wout] += t * colw
            elif t < 0.0:
                A[j * W:(j + 1) * W, c0:c0 + Wout] += (1.0 + t) * colw
                dst = UP if j == 0 else (j - 1) * W
                A[dst:dst + W, c0:c0 + Wout] += (-t) * colw
            else:
                A[j * W:(j + 1) * W, c0:c0 + Wout] += colw
    return A, need_halo


# ----------------------------------- kernel -----------------------------------

def _make_kernel(R_tile, W, k, Hk, need_halo, exact_f32):
    kW = k * W

    def kernel(x_ref, a_ref, o_ref):
        xp = x_ref[...]                                  # (R_tile, k*W), input dtype
        if need_halo:
            head = xp[:, :W]                             # first input row of each pack
            tail = xp[:, kW - W:]                        # last input row of each pack
            if Hk == 1:
                # whole feature map packed in one row -> halos are clamp-to-edge rows
                up, dn = head, tail
            else:
                # narrow (R,1) mask + narrow (R,W) shifted halos (clamp at map edges)
                row = jax.lax.broadcasted_iota(jnp.int32, (R_tile, 1), 0)
                prev_tail = jnp.concatenate([tail[:1], tail[:-1]], axis=0)
                next_head = jnp.concatenate([head[1:], head[-1:]], axis=0)
                up = jnp.where(row % Hk == 0, head, prev_tail)
                dn = jnp.where(row % Hk == Hk - 1, tail, next_head)
            lhs = jnp.concatenate([xp, up, dn], axis=-1)  # (R_tile, (k+2)*W)
        else:
            lhs = xp

        out = jnp.dot(
            lhs, a_ref[...],
            preferred_element_type=jnp.float32,
            # HIGHEST pins the exact multi-pass f32 path so nearest (1.0-weight
            # columns) is bit-exact; bf16 inputs use the native bf16 MXU path.
            precision=jax.lax.Precision.HIGHEST if exact_f32 else None,
        )
        o_ref[...] = out.astype(o_ref.dtype)

    return kernel


# ------------------------------- tiling helpers --------------------------------

def _pick_k(H, W, fh, fw, target_lanes=256):
    """Smallest divisor k of H such that a packed output row has >= target_lanes
    lanes (dense, unmasked stores); whole map per row if none reaches it."""
    lanes_per_row = fh * W * fw
    for d in range(1, H + 1):
        if H % d == 0 and d * lanes_per_row >= target_lanes:
            return d
    return H


def _vmem_params():
    """(per-step VMEM budget, base vmem_limit_bytes), gated on TPU generation."""
    vmem_phys = None
    try:
        vmem_phys = getattr(pltpu.get_tpu_info(), "vmem_capacity_bytes", None)
    except Exception:
        vmem_phys = None
    if vmem_phys is not None and vmem_phys >= 96 * 1024 * 1024:
        # v5e / v6e: 128 MiB physical VMEM -> bigger tiles, fewer grid steps.
        return 24 * 1024 * 1024, 64 * 1024 * 1024
    # v7x (64 MiB) or unknown generation: stay conservative.
    return 10 * 1024 * 1024, 32 * 1024 * 1024


def _pick_tile_nc(NC, Hk, step_bytes, budget, row_align):
    """Largest divisor of NC whose per-step footprint fits the budget and whose
    row count obeys sublane alignment; prefer >= 4 grid steps (2 per v7x
    TensorCore) so prefetch/writeback stays double-buffered."""
    divs = [d for d in range(1, NC + 1) if NC % d == 0]
    aligned = [d for d in divs if (d * Hk) % row_align == 0 or d == NC]
    fit = [d for d in aligned if step_bytes(d * Hk) <= budget]
    for min_steps in (4, 2):
        c = [d for d in fit if NC // d >= min_steps]
        if c:
            return max(c)
    if fit:
        return max(fit)
    # Nothing fits the budget: smallest aligned tile; caller raises vmem_limit.
    # TODO(synk): H-tile inside a single map (1-row halo blocks) so huge feature
    # maps stay pipelined within v7x's 64 MiB VMEM.
    return min(aligned)


# ----------------------------------- wrapper -----------------------------------

def unpooling2d(x, factor=(2, 2), method="nearest"):
    """Pallas TPU implementation of pygmalion Unpooling2d.forward (NCHW)."""
    assert method in ("nearest", "interpolate")
    if isinstance(factor, int):
        factor = (factor, factor)
    fh, fw = int(factor[0]), int(factor[1])
    N, C, H, W = x.shape
    NC = N * C
    Wout = W * fw

    in_dt = jnp.dtype(x.dtype)
    if in_dt == jnp.dtype(jnp.bfloat16):
        cdtype, exact_f32 = jnp.bfloat16, False      # native bf16 MXU, no upcast
    else:
        cdtype, exact_f32 = jnp.float32, True
    out_dtype = in_dt if in_dt in (jnp.dtype(jnp.bfloat16), jnp.dtype(jnp.float32)) \
        else jnp.dtype(jnp.float32)

    k = _pick_k(H, W, fh, fw)                        # input rows packed per kernel row
    Hk = H // k
    kW = k * W
    lanes = k * fh * Wout                            # output lanes per kernel row

    A_np, need_halo = _build_weight_matrix(H, W, fh, fw, k, method)
    A = jnp.asarray(A_np, dtype=cdtype)

    x2 = x.reshape(NC * Hk, kW)                      # free metadata reshape
    if x2.dtype != jnp.dtype(cdtype):
        x2 = x2.astype(cdtype)

    in_isz = jnp.dtype(cdtype).itemsize
    out_isz = jnp.dtype(out_dtype).itemsize
    halo_w = 2 * W if need_halo else 0

    def step_bytes(r_tile):
        io = 2 * r_tile * (kW * in_isz + lanes * out_isz)          # double-buffered HBM blocks
        scratch = r_tile * ((kW + halo_w) * in_isz + lanes * 4)    # lhs + f32 MXU result
        return io + scratch

    budget, vmem_limit = _vmem_params()
    row_align = {1: 32, 2: 16}.get(in_isz, 8)        # sublane multiple per dtype
    tile_nc = _pick_tile_nc(NC, Hk, step_bytes, budget, row_align)
    R_tile = tile_nc * Hk
    grid = (NC // tile_nc,)

    a_bytes = int(A.size) * in_isz
    vmem_limit = int(min(max(vmem_limit, step_bytes(R_tile) + a_bytes + (4 << 20)),
                         100 * 1024 * 1024))

    out2 = pl.pallas_call(
        _make_kernel(R_tile, W, k, Hk, need_halo, exact_f32),
        out_shape=jax.ShapeDtypeStruct((NC * Hk, lanes), out_dtype),
        grid=grid,
        in_specs=[
            pl.BlockSpec((R_tile, kW), lambda i: (i, 0)),
            pl.BlockSpec(A.shape, lambda i: (0, 0)),    # resident constant weights
        ],
        out_specs=pl.BlockSpec((R_tile, lanes), lambda i: (i, 0)),
        compiler_params=pltpu.CompilerParams(
            dimension_semantics=("parallel",),
            vmem_limit_bytes=vmem_limit,
        ),
    )(x2, A)

    # (NC*Hk, k*fh*W*fw) is byte-identical to (N, C, H*fh, W*fw): free reshape.
    out = out2.reshape(N, C, H * fh, W * fw)
    return out if out.dtype == in_dt else out.astype(in_dt)


# ------------------------------ numpy references -------------------------------

def _nearest_ref(x, fh, fw):
    return np.repeat(np.repeat(x, fh, axis=2), fw, axis=3)


def _bilinear_ref(x, fh, fw):
    # PyTorch bilinear, align_corners=False, integer scale factor
    N, C, H, W = x.shape
    OH, OW = H * fh, W * fw
    oy = np.clip((np.arange(OH) + 0.5) / fh - 0.5, 0.0, None)
    ox = np.clip((np.arange(OW) + 0.5) / fw - 0.5, 0.0, None)
    y0 = np.floor(oy).astype(np.int64)
    x0 = np.floor(ox).astype(np.int64)
    y1 = np.minimum(y0 + 1, H - 1)
    x1 = np.minimum(x0 + 1, W - 1)
    wy = (oy - y0).astype(np.float32)[None, None, :, None]
    wx = (ox - x0).astype(np.float32)[None, None, None, :]
    g = lambda yi, xi: x[:, :, yi][:, :, :, xi]
    out = ((1 - wy) * (1 - wx) * g(y0, x0) + (1 - wy) * wx * g(y0, x1)
           + wy * (1 - wx) * g(y1, x0) + wy * wx * g(y1, x1))
    return out.astype(x.dtype)


if __name__ == "__main__":
    key = jax.random.PRNGKey(0)
    x = jax.random.normal(key, (2, 4, 16, 16), dtype=jnp.float32)

    # method='nearest' (module default)
    out_nearest = jax.block_until_ready(unpooling2d(x, factor=(2, 2), method="nearest"))
    ref_nearest = _nearest_ref(np.asarray(x), 2, 2)
    assert out_nearest.shape == (2, 4, 32, 32)
    np.testing.assert_allclose(np.asarray(out_nearest), ref_nearest, rtol=0, atol=0)

    # method='interpolate' (bilinear, align_corners=False)
    out_bilin = jax.block_until_ready(unpooling2d(x, factor=(2, 2), method="interpolate"))
    ref_bilin = _bilinear_ref(np.asarray(x), 2, 2)
    assert out_bilin.shape == (2, 4, 32, 32)
    np.testing.assert_allclose(np.asarray(out_bilin), ref_bilin, rtol=1e-5, atol=1e-5)

    print("KERNEL_OK")
</pallas_src>

<mosaic_0001>
module attributes {stable_mosaic.version = 11 : i64} {
  func.func @kernel(%arg0: i32, %arg1: memref<8x64xf32, #tpu.memory_space<vmem>>, %arg2: memref<64x256xf32, #tpu.memory_space<vmem>>, %arg3: memref<8x256xf32, #tpu.memory_space<vmem>>) attributes {dimension_semantics = [#tpu.dimension_semantics<parallel>], iteration_bounds = array<i64: 4>, scalar_prefetch = 0 : i64, scratch_operands = 0 : i64, tpu.core_type = #tpu.core_type<tc>, window_params = [{transform_indices = @transform_0, window_bounds = array<i64: 8, 64>}, {pipeline_mode = #tpu.pipeline_mode<synchronous>, transform_indices = @transform_1, window_bounds = array<i64: 64, 256>}, {transform_indices = @transform_2, window_bounds = array<i64: 8, 256>}]} {
    %c0 = arith.constant 0 : index
    %c0_0 = arith.constant 0 : index
    %0 = vector.load %arg1[%c0, %c0_0] : memref<8x64xf32, #tpu.memory_space<vmem>>, vector<8x64xf32>
    %c0_1 = arith.constant 0 : index
    %c0_2 = arith.constant 0 : index
    %1 = vector.load %arg2[%c0_1, %c0_2] : memref<64x256xf32, #tpu.memory_space<vmem>>, vector<64x256xf32>
    %cst = arith.constant dense<0.000000e+00> : vector<8x256xf32>
    %2 = tpu.matmul %0, %1, %cst {dimension_numbers = #tpu.dot_dimension_numbers<[1], [0], [0], [1], [0, 0, 1, 1], [], []>, precision = #tpu.contract_precision<fp32>} : vector<8x64xf32>, vector<64x256xf32>, vector<8x256xf32> -> vector<8x256xf32>
    %c0_3 = arith.constant 0 : index
    %c0_4 = arith.constant 0 : index
    %3 = vector.load %arg3[%c0_3, %c0_4] : memref<8x256xf32, #tpu.memory_space<vmem>>, vector<8x256xf32>
    tpu.vector_store %arg3[%c0_3, %c0_4], %2 {strides = array<i32>} : memref<8x256xf32, #tpu.memory_space<vmem>>, vector<8x256xf32>,
    return
  }
  func.func @transform_0(%arg0: i32) -> (i32, i32) {
    %c0_i32 = arith.constant 0 : i32
    %c0_i32_0 = arith.constant 0 : i32
    return %arg0, %c0_i32 : i32, i32
  }
  func.func @transform_1(%arg0: i32) -> (i32, i32) {
    %c0_i32 = arith.constant 0 : i32
    %c0_i32_0 = arith.constant 0 : i32
    %c0_i32_1 = arith.constant 0 : i32
    return %c0_i32, %c0_i32_0 : i32, i32
  }
  func.func @transform_2(%arg0: i32) -> (i32, i32) {
    %c0_i32 = arith.constant 0 : i32
    %c0_i32_0 = arith.constant 0 : i32
    return %arg0, %c0_i32 : i32, i32
  }
}

</mosaic_0001>

<llo_original>
// kernel: tpu_custom_call.1
$region0: #{tpu_custom_call.1}
  #allocation0 [shape = 'u32[]', space=smem, size = 0x4, offset = 0x4, fixed_abs, tag = 'smem constant byte address 0x4 - core index']
  #allocation1 [shape = 'u32[72,128]{1,0:T(1,128)}', space=vmem, size = 0x9000, scoped, tag = 'internal scratch']
  %s0 = inlined_call_operand.hbm [shape: f32[32,64], index: 0, kind: input, shape index: {}]
  %s1 = inlined_call_operand.hbm [shape: f32[64,256], index: 1, kind: input, shape index: {}]
  %s2 = inlined_call_operand.hbm [shape: f32[32,256], index: 2, kind: output, shape index: {}]
  %s3 = sld [smem:[#allocation0]]
  $region49: #{tpu_custom_call.1} parent=0
    _
  %s5 = ssub.s32 1, %s3
  %s6 = scalar_select 0, %s5, %s3
  $region1: #{tpu_custom_call.1} parent=0
    #allocation2 [shape = 'u8[8192]{0}', space=vmem, size = 0x2000, scoped, tag = 'input window, operand 0']
    #allocation3 [shape = 's32[2]{0}', space=sflag, size = 0x8, scoped, tag = 'scoped memory for tpu_custom_call.1']
    #allocation4 [shape = 's32[2]{0}', space=sflag, size = 0x8, scoped, tag = 'scoped memory for tpu_custom_call.1']
    #allocation5 [shape = 'u8[65536]{0}', space=vmem, size = 0x10000, scoped, tag = 'input window, operand 1, single buffered']
    #allocation6 [shape = 's32[1]{0}', space=sflag, size = 0x4, scoped, tag = 'scoped memory for tpu_custom_call.1']
    #allocation7 [shape = 'u8[16384]{0}', space=vmem, size = 0x4000, scoped, tag = 'output window, operand 0']
    %7 = vsyncpa [#allocation3], 0
    %s8 = scalar_lea.sflag [#allocation3], 1
    %9 = vsyncpa %s8, 0
    %10 = vsyncpa [#allocation6], 0
    %11 = vsyncpa [#allocation4], 0
    %s12 = scalar_lea.sflag [#allocation4], 1
    %13 = vsyncpa %s12, 0
    loop: start=0, step=1, limit=6
    $region2: #{tpu_custom_call.1} parent=1 // loop_pre_header
      _
    $region3: #{tpu_custom_call.1} parent=1 // loop_header
      %s15 = sphi 0, %s19
      %p16 = scmp.ge.s32.totalorder %s15, 6
      %s25 = sphi 0, %s27
      %s28 = sphi 0, %s25
      %s29 = sphi 0, %s28
      %s45 = sphi 0, %s29
      %s49 = sphi 0, %s49
      %s51 = sphi 0, %s49
      %s52 = sphi 0, %s51
      %s66 = sphi 0, %s52
      %s72 = sphi 0, %s74
      %s75 = sphi 0, %s72
      %s76 = sphi 0, %s75
      %s92 = sphi 0, %s76
    $region4: #{tpu_custom_call.1} parent=1 // loop_header_branch
      %18 = sbr.rel (%p16) target = $region8
    $region5: #{tpu_custom_call.1} parent=1 // loop_body
      %s20 = ssub.s32 %s15, 1
      %s21 = ssub.s32 %s15, 2
      %s22 = sadd.s32 %s15, 1
      %s23 = ssub.s32 %s15, %s22
      %p24 = scmp.eq.s32.totalorder %s23, 0
      %s26 = sadd.s32 %s25, 1
      %s27 = scalar_select %p24, %s25, %s26
      %p30 = pneg %p24
      %p31 = scmp.eq.s32.totalorder %s15, 3
      %p32 = por %p30, %p31
      %p33 = scmp.ne.s32.totalorder %s25, %s28
      %p34 = scmp.eq.s32.totalorder %s15, 0
      %p35 = por %p33, %p34
      %p36 = scmp.ne.s32.totalorder %s25, %s28
      %p37 = scmp.eq.s32.totalorder %s20, 3
      %p38 = por %p36, %p37
      %p39 = scmp.ne.s32.totalorder %s28, %s29
      %p40 = scmp.eq.s32.totalorder %s20, 0
      %p41 = por %p39, %p40
      %p42 = scmp.ne.s32.totalorder %s28, %s29
      %p43 = scmp.eq.s32.totalorder %s21, 3
      %p44 = por %p42, %p43
      %p46 = scmp.ne.s32.totalorder %s29, %s45
      %p47 = scmp.eq.s32.totalorder %s21, 0
      %p48 = por %p46, %p47
      %s50 = sadd.s32 %s49, 1
      %p53 = scmp.eq.s32.totalorder %s15, 3
      %p54 = scmp.ne.s32.totalorder %s49, %s51
      %p55 = scmp.eq.s32.totalorder %s15, 0
      %p56 = por %p54, %p55
      %p57 = scmp.ne.s32.totalorder %s49, %s51
      %p58 = scmp.eq.s32.totalorder %s20, 3
      %p59 = por %p57, %p58
      %p60 = scmp.ne.s32.totalorder %s51, %s52
      %p61 = scmp.eq.s32.totalorder %s20, 0
      %p62 = por %p60, %p61
      %p63 = scmp.ne.s32.totalorder %s51, %s52
      %p64 = scmp.eq.s32.totalorder %s21, 3
      %p65 = por %p63, %p64
      %p67 = scmp.ne.s32.totalorder %s52, %s66
      %p68 = scmp.eq.s32.totalorder %s21, 0
      %p69 = por %p67, %p68
      %s70 = ssub.s32 %s15, %s22
      %p71 = scmp.eq.s32.totalorder %s70, 0
      %s73 = sadd.s32 %s72, 1
      %s74 = scalar_select %p71, %s72, %s73
      %p77 = pneg %p71
      %p78 = scmp.eq.s32.totalorder %s15, 3
      %p79 = por %p77, %p78
      %p80 = scmp.ne.s32.totalorder %s72, %s75
      %p81 = scmp.eq.s32.totalorder %s15, 0
      %p82 = por %p80, %p81
      %p83 = scmp.ne.s32.totalorder %s72, %s75
      %p84 = scmp.eq.s32.totalorder %s20, 3
      %p85 = por %p83, %p84
      %p86 = scmp.ne.s32.totalorder %s75, %s76
      %p87 = scmp.eq.s32.totalorder %s20, 0
      %p88 = por %p86, %p87
      %p89 = scmp.ne.s32.totalorder %s75, %s76
      %p90 = scmp.eq.s32.totalorder %s21, 3
      %p91 = por %p89, %p90
      %p93 = scmp.ne.s32.totalorder %s76, %s92
      %p94 = scmp.eq.s32.totalorder %s21, 0
      %p95 = por %p93, %p94
      %p96 = scmp.le.s32.totalorder 1, %s15
      %p97 = scmp.lt.s32.totalorder %s15, 5
      %p98 = pnand %p96, %p97
      %p99 = pneg %p98
      // Predicated region
      $region9: #{tpu_custom_call.1} parent=5 // pred_check
        _
      $region10: #{tpu_custom_call.1} parent=5 // pred_check_branch
        %101 = sbr.rel (%p98) target = $region12
      $region11: #{tpu_custom_call.1} parent=5 // pred_region
        %s102 = ssub.s32 %s15, 1
        // Predicated region
        $region13: #{tpu_custom_call.1} parent=11 // pred_check
          %p103 = pneg %p62
        $region14: #{tpu_custom_call.1} parent=11 // pred_check_branch
          %105 = sbr.rel (%p103) target = $region16
        $region15: #{tpu_custom_call.1} parent=11 // pred_region
          %107 = vsyncadd [#allocation6], 0
          %s108 = sshll.u32 %s1, 4
          %s109 = int_to_ptr.hbm [resolvable:$true] %s108
          %s110 = sshll.u32 [#allocation5], 4
          %s111 = int_to_ptr.vmem [resolvable:$true] %s110
          %116 = dma.hbm_to_vmem [thread:$0]  %s109, 2048, %s111, [#allocation6], 256, 256, 16
        $region16: #{tpu_custom_call.1} parent=11 // pred_fallthru
          _
      $region12: #{tpu_custom_call.1} parent=5 // pred_fallthru
        _
      %p117 = scmp.lt.s32.totalorder %s15, 4
      // Predicated region
      $region17: #{tpu_custom_call.1} parent=5 // pred_check
        %p118 = pneg %p117
      $region18: #{tpu_custom_call.1} parent=5 // pred_check_branch
        %120 = sbr.rel (%p118) target = $region20
      $region19: #{tpu_custom_call.1} parent=5 // pred_region
        // Predicated region
        $region21: #{tpu_custom_call.1} parent=19 // pred_check
          %p121 = pneg %p35
        $region22: #{tpu_custom_call.1} parent=19 // pred_check_branch
          %123 = sbr.rel (%p121) target = $region24
        $region23: #{tpu_custom_call.1} parent=19 // pred_region
          %s124 = sand.u32 %s25, 1
          %s125 = scalar_lea.sflag [#allocation3], %s124
          %s126 = sand.u32 %s25, 1
          %s127 = smul.addr %s126, 8
          %s128 = scalar_lea.vmem [#allocation2], %s127
          %130 = vsyncadd %s125, 0
          %s131 = smul.addr %s15, 8
          %s132 = scalar_lea.hbm %s0, %s131
          %s134 = sshll.u32 %s132, 4
          %s135 = int_to_ptr.hbm [resolvable:$true] %s134
          %s136 = sshll.u32 %s128, 4
          %s137 = int_to_ptr.vmem [resolvable:$true] %s136
          %139 = dma.hbm_to_vmem [thread:$0]  %s135, 128, %s137, %s125
        $region24: #{tpu_custom_call.1} parent=19 // pred_fallthru
          _
      $region20: #{tpu_custom_call.1} parent=5 // pred_fallthru
        _
      %p140 = scmp.le.s32.totalorder 1, %s15
      %p141 = scmp.lt.s32.totalorder %s15, 5
      %p142 = pnand %p140, %p141
      %p143 = pneg %p142
      // Predicated region
      $region25: #{tpu_custom_call.1} parent=5 // pred_check
        _
      $region26: #{tpu_custom_call.1} parent=5 // pred_check_branch
        %145 = sbr.rel (%p142) target = $region28
      $region27: #{tpu_custom_call.1} parent=5 // pred_region
        %s146 = ssub.s32 %s15, 1
        %s147 = sand.u32 %s28, 1
        %s148 = scalar_lea.sflag [#allocation3], %s147
        %s149 = sand.u32 %s28, 1
        %s150 = smul.addr %s149, 8
        %s151 = scalar_lea.vmem [#allocation2], %s150
        // Predicated region
        $region29: #{tpu_custom_call.1} parent=27 // pred_check
          %p152 = pneg %p41
        $region30: #{tpu_custom_call.1} parent=27 // pred_check_branch
          %154 = sbr.rel (%p152) target = $region32
        $region31: #{tpu_custom_call.1} parent=27 // pred_region
          %156 = dma.done %s148, 128
        $region32: #{tpu_custom_call.1} parent=27 // pred_fallthru
          _
        // Predicated region
        $region33: #{tpu_custom_call.1} parent=27 // pred_check
          %p157 = pneg %p62
        $region34: #{tpu_custom_call.1} parent=27 // pred_check_branch
          %159 = sbr.rel (%p157) target = $region36
        $region35: #{tpu_custom_call.1} parent=27 // pred_region
          %161 = dma.done [#allocation6], 2048
        $region36: #{tpu_custom_call.1} parent=27 // pred_fallthru
          _
        %s162 = sand.u32 %s28, 1
        %s163 = scalar_lea.sflag [#allocation3], %s162
        %s164 = sand.u32 %s28, 1
        %s165 = smul.addr %s164, 8
        %s166 = scalar_lea.vmem [#allocation2], %s165
        %p167 = pneg %p41
        %p168 = pneg %p38
        %p169 = pneg %p62
        %p170 = pneg %p59
        %p171 = pneg %p88
        %p172 = pneg %p85
        %s173 = sand.u32 %s75, 1
        %s174 = scalar_lea.sflag [#allocation4], %s173
        %s175 = sand.u32 %s75, 1
        %s176 = smul.addr %s175, 16
        %s177 = scalar_lea.vmem [#allocation7], %s176
        %v178 = vld [vmem:[%s151] sm:$0xff]
        %v179 = vld [vmem:[#allocation5] sm:$0xff]
        %v180 = vld [vmem:[#allocation5 + $0x8] sm:$0xff]
        %v181 = vld [vmem:[#allocation5 + $0x10] sm:$0xff]
        %v182 = vld [vmem:[#allocation5 + $0x18] sm:$0xff]
        %v183 = vld [vmem:[#allocation5 + $0x20] sm:$0xff]
        %v184 = vld [vmem:[#allocation5 + $0x28] sm:$0xff]
        %v185 = vld [vmem:[#allocation5 + $0x30] sm:$0xff]
        %v186 = vld [vmem:[#allocation5 + $0x38] sm:$0xff]
        %v187 = vld [vmem:[#allocation5 + $0x40] sm:$0xff]
        %v188 = vld [vmem:[#allocation5 + $0x48] sm:$0xff]
        %v189 = vld [vmem:[#allocation5 + $0x50] sm:$0xff]
        %v190 = vld [vmem:[#allocation5 + $0x58] sm:$0xff]
        %v191 = vld [vmem:[#allocation5 + $0x60] sm:$0xff]
        %v192 = vld [vmem:[#allocation5 + $0x68] sm:$0xff]
        %v193 = vld [vmem:[#allocation5 + $0x70] sm:$0xff]
        %v194 = vld [vmem:[#allocation5 + $0x78] sm:$0xff]
        %vm195 = vcmask 523264
        %v197 = vsel %vm195, %v178, 0
        %199 = vmatpush.msra.mxu0 0.0
        %200 = vmatpush.msra.mxu0 0.0
        %201 = vmatpush.msra.mxu0 0.0
        %202 = vmatpush.msra.mxu0 0.0
        %203 = vmatpush.msra.mxu0 0.0
        %204 = vmatpush.msra.mxu0 0.0
        %205 = vmatpush.msra.mxu0 0.0
        %206 = vmatpush.msra.mxu0 0.0
        %v207 = vand.u32 %v193, 4294901760
        %208 = vmatpush.msra.mxu0 %v207
        %v209 = vand.u32 %v191, 4294901760
        %210 = vmatpush.msra.mxu0 %v209
        %v211 = vand.u32 %v189, 4294901760
        %212 = vmatpush.msra.mxu0 %v211
        %v213 = vand.u32 %v187, 4294901760
        %214 = vmatpush.msra.mxu0 %v213
        %v215 = vand.u32 %v185, 4294901760
        %216 = vmatpush.msra.mxu0 %v215
        %v217 = vand.u32 %v183, 4294901760
        %218 = vmatpush.msra.mxu0 %v217
        %v219 = vand.u32 %v181, 4294901760
        %220 = vmatpush.msra.mxu0 %v219
        %v221 = vand.u32 %v179, 4294901760
        %222 = vmatpush.msra.mxu0 %v221
        %v223 = vand.u32 %v197, 4294901760
        %v224 = vsub.f32 %v197, %v223
        %v225 = vand.u32 %v224, 4294901760
        %v226 = vsub.f32 %v224, %v225
        %v227 = vand.u32 %v226, 4294901760
        %228 = vmatmul.f32.gmra.mxu0 %v227
        %v229 = vpop.f32.mrf.mxu0
        %v230 = vadd.f32 0.0, %v229
        %231 = vdwg.mxu0
        %232 = vmatpush.msra.mxu0 0.0
        %233 = vmatpush.msra.mxu0 0.0
        %234 = vmatpush.msra.mxu0 0.0
        %235 = vmatpush.msra.mxu0 0.0
        %236 = vmatpush.msra.mxu0 0.0
        %237 = vmatpush.msra.mxu0 0.0
        %238 = vmatpush.msra.mxu0 0.0
        %239 = vmatpush.msra.mxu0 0.0
        %v240 = vand.u32 %v193, 4294901760
        %v241 = vsub.f32 %v193, %v240
        %v242 = vand.u32 %v241, 4294901760
        %v243 = vsub.f32 %v241, %v242
        %v244 = vand.u32 %v243, 4294901760
        %245 = vmatpush.msra.mxu0 %v244
        %v246 = vand.u32 %v191, 4294901760
        %v247 = vsub.f32 %v191, %v246
        %v248 = vand.u32 %v247, 4294901760
        %v249 = vsub.f32 %v247, %v248
        %v250 = vand.u32 %v249, 4294901760
        %251 = vmatpush.msra.mxu0 %v250
        %v252 = vand.u32 %v189, 4294901760
        %v253 = vsub.f32 %v189, %v252
        %v254 = vand.u32 %v253, 4294901760
        %v255 = vsub.f32 %v253, %v254
        %v256 = vand.u32 %v255, 4294901760
        %257 = vmatpush.msra.mxu0 %v256
        %v258 = vand.u32 %v187, 4294901760
        %v259 = vsub.f32 %v187, %v258
        %v260 = vand.u32 %v259, 4294901760
        %v261 = vsub.f32 %v259, %v260
        %v262 = vand.u32 %v261, 4294901760
        %263 = vmatpush.msra.mxu0 %v262
        %v264 = vand.u32 %v185, 4294901760
        %v265 = vsub.f32 %v185, %v264
        %v266 = vand.u32 %v265, 4294901760
        %v267 = vsub.f32 %v265, %v266
        %v268 = vand.u32 %v267, 4294901760
        %269 = vmatpush.msra.mxu0 %v268
        %v270 = vand.u32 %v183, 4294901760
        %v271 = vsub.f32 %v183, %v270
        %v272 = vand.u32 %v271, 4294901760
        %v273 = vsub.f32 %v271, %v272
        %v274 = vand.u32 %v273, 4294901760
        %275 = vmatpush.msra.mxu0 %v274
        %v276 = vand.u32 %v181, 4294901760
        %v277 = vsub.f32 %v181, %v276
        %v278 = vand.u32 %v277, 4294901760
        %v279 = vsub.f32 %v277, %v278
        %v280 = vand.u32 %v279, 4294901760
        %281 = vmatpush.msra.mxu0 %v280
        %v282 = vand.u32 %v179, 4294901760
        %v283 = vsub.f32 %v179, %v282
        %v284 = vand.u32 %v283, 4294901760
        %v285 = vsub.f32 %v283, %v284
        %v286 = vand.u32 %v285, 4294901760
        %287 = vmatpush.msra.mxu0 %v286
        %v288 = vand.u32 %v197, 4294901760
        %289 = vmatmul.f32.gmra.mxu0 %v288
        %v290 = vpop.f32.mrf.mxu0
        %v291 = vadd.f32 %v230, %v290
        %292 = vdwg.mxu0
        %293 = vmatpush.msra.mxu0 0.0
        %294 = vmatpush.msra.mxu0 0.0
        %295 = vmatpush.msra.mxu0 0.0
        %296 = vmatpush.msra.mxu0 0.0
        %297 = vmatpush.msra.mxu0 0.0
        %298 = vmatpush.msra.mxu0 0.0
        %299 = vmatpush.msra.mxu0 0.0
        %300 = vmatpush.msra.mxu0 0.0
        %v301 = vand.u32 %v193, 4294901760
        %v302 = vsub.f32 %v193, %v301
        %303 = vmatpush.msra.mxu0 %v302
        %v304 = vand.u32 %v191, 4294901760
        %v305 = vsub.f32 %v191, %v304
        %306 = vmatpush.msra.mxu0 %v305
        %v307 = vand.u32 %v189, 4294901760
        %v308 = vsub.f32 %v189, %v307
        %309 = vmatpush.msra.mxu0 %v308
        %v310 = vand.u32 %v187, 4294901760
        %v311 = vsub.f32 %v187, %v310
        %312 = vmatpush.msra.mxu0 %v311
        %v313 = vand.u32 %v185, 4294901760
        %v314 = vsub.f32 %v185, %v313
        %315 = vmatpush.msra.mxu0 %v314
        %v316 = vand.u32 %v183, 4294901760
        %v317 = vsub.f32 %v183, %v316
        %318 = vmatpush.msra.mxu0 %v317
        %v319 = vand.u32 %v181, 4294901760
        %v320 = vsub.f32 %v181, %v319
        %321 = vmatpush.msra.mxu0 %v320
        %v322 = vand.u32 %v179, 4294901760
        %v323 = vsub.f32 %v179, %v322
        %324 = vmatpush.msra.mxu0 %v323
        %v325 = vand.u32 %v197, 4294901760
        %v326 = vsub.f32 %v197, %v325
        %327 = vmatmul.f32.gmra.mxu0 %v326
        %v328 = vpop.f32.mrf.mxu0
        %v329 = vadd.f32 %v291, %v328
        %330 = vdwg.mxu0
        %331 = vmatpush.msra.mxu0 0.0
        %332 = vmatpush.msra.mxu0 0.0
        %333 = vmatpush.msra.mxu0 0.0
        %334 = vmatpush.msra.mxu0 0.0
        %335 = vmatpush.msra.mxu0 0.0
        %336 = vmatpush.msra.mxu0 0.0
        %337 = vmatpush.msra.mxu0 0.0
        %338 = vmatpush.msra.mxu0 0.0
        %v339 = vand.u32 %v193, 4294901760
        %340 = vmatpush.msra.mxu0 %v339
        %v341 = vand.u32 %v191, 4294901760
        %342 = vmatpush.msra.mxu0 %v341
        %v343 = vand.u32 %v189, 4294901760
        %344 = vmatpush.msra.mxu0 %v343
        %v345 = vand.u32 %v187, 4294901760
        %346 = vmatpush.msra.mxu0 %v345
        %v347 = vand.u32 %v185, 4294901760
        %348 = vmatpush.msra.mxu0 %v347
        %v349 = vand.u32 %v183, 4294901760
        %350 = vmatpush.msra.mxu0 %v349
        %v351 = vand.u32 %v181, 4294901760
        %352 = vmatpush.msra.mxu0 %v351
        %v353 = vand.u32 %v179, 4294901760
        %354 = vmatpush.msra.mxu0 %v353
        %v355 = vand.u32 %v197, 4294901760
        %v356 = vsub.f32 %v197, %v355
        %v357 = vand.u32 %v356, 4294901760
        %358 = vmatmul.f32.gmra.mxu0 %v357
        %v359 = vpop.f32.mrf.mxu0
        %v360 = vadd.f32 %v329, %v359
        %361 = vdwg.mxu0
        %362 = vmatpush.msra.mxu0 0.0
        %363 = vmatpush.msra.mxu0 0.0
        %364 = vmatpush.msra.mxu0 0.0
        %365 = vmatpush.msra.mxu0 0.0
        %366 = vmatpush.msra.mxu0 0.0
        %367 = vmatpush.msra.mxu0 0.0
        %368 = vmatpush.msra.mxu0 0.0
        %369 = vmatpush.msra.mxu0 0.0
        %v370 = vand.u32 %v193, 4294901760
        %v371 = vsub.f32 %v193, %v370
        %v372 = vand.u32 %v371, 4294901760
        %373 = vmatpush.msra.mxu0 %v372
        %v374 = vand.u32 %v191, 4294901760
        %v375 = vsub.f32 %v191, %v374
        %v376 = vand.u32 %v375, 4294901760
        %377 = vmatpush.msra.mxu0 %v376
        %v378 = vand.u32 %v189, 4294901760
        %v379 = vsub.f32 %v189, %v378
        %v380 = vand.u32 %v379, 4294901760
        %381 = vmatpush.msra.mxu0 %v380
        %v382 = vand.u32 %v187, 4294901760
        %v383 = vsub.f32 %v187, %v382
        %v384 = vand.u32 %v383, 4294901760
        %385 = vmatpush.msra.mxu0 %v384
        %v386 = vand.u32 %v185, 4294901760
        %v387 = vsub.f32 %v185, %v386
        %v388 = vand.u32 %v387, 4294901760
        %389 = vmatpush.msra.mxu0 %v388
        %v390 = vand.u32 %v183, 4294901760
        %v391 = vsub.f32 %v183, %v390
        %v392 = vand.u32 %v391, 4294901760
        %393 = vmatpush.msra.mxu0 %v392
        %v394 = vand.u32 %v181, 4294901760
        %v395 = vsub.f32 %v181, %v394
        %v396 = vand.u32 %v395, 4294901760
        %397 = vmatpush.msra.mxu0 %v396
        %v398 = vand.u32 %v179, 4294901760
        %v399 = vsub.f32 %v179, %v398
        %v400 = vand.u32 %v399, 4294901760
        %401 = vmatpush.msra.mxu0 %v400
        %v402 = vand.u32 %v197, 4294901760
        %403 = vmatmul.f32.gmra.mxu0 %v402
        %v404 = vpop.f32.mrf.mxu0
        %v405 = vadd.f32 %v360, %v404
        %406 = vdwg.mxu0
        %407 = vmatpush.msra.mxu0 0.0
        %408 = vmatpush.msra.mxu0 0.0
        %409 = vmatpush.msra.mxu0 0.0
        %410 = vmatpush.msra.mxu0 0.0
        %411 = vmatpush.msra.mxu0 0.0
        %412 = vmatpush.msra.mxu0 0.0
        %413 = vmatpush.msra.mxu0 0.0
        %414 = vmatpush.msra.mxu0 0.0
        %v415 = vand.u32 %v193, 4294901760
        %416 = vmatpush.msra.mxu0 %v415
        %v417 = vand.u32 %v191, 4294901760
        %418 = vmatpush.msra.mxu0 %v417
        %v419 = vand.u32 %v189, 4294901760
        %420 = vmatpush.msra.mxu0 %v419
        %v421 = vand.u32 %v187, 4294901760
        %422 = vmatpush.msra.mxu0 %v421
        %v423 = vand.u32 %v185, 4294901760
        %424 = vmatpush.msra.mxu0 %v423
        %v425 = vand.u32 %v183, 4294901760
        %426 = vmatpush.msra.mxu0 %v425
        %v427 = vand.u32 %v181, 4294901760
        %428 = vmatpush.msra.mxu0 %v427
        %v429 = vand.u32 %v179, 4294901760
        %430 = vmatpush.msra.mxu0 %v429
        %v431 = vand.u32 %v197, 4294901760
        %432 = vmatmul.f32.gmra.mxu0 %v431
        %v433 = vpop.f32.mrf.mxu0
        %v434 = vadd.f32 %v405, %v433
        %435 = vdwg.mxu0
        %436 = vmatpush.msra.mxu0 0.0
        %437 = vmatpush.msra.mxu0 0.0
        %438 = vmatpush.msra.mxu0 0.0
        %439 = vmatpush.msra.mxu0 0.0
        %440 = vmatpush.msra.mxu0 0.0
        %441 = vmatpush.msra.mxu0 0.0
        %442 = vmatpush.msra.mxu0 0.0
        %443 = vmatpush.msra.mxu0 0.0
        %v444 = vand.u32 %v194, 4294901760
        %445 = vmatpush.msra.mxu0 %v444
        %v446 = vand.u32 %v192, 4294901760
        %447 = vmatpush.msra.mxu0 %v446
        %v448 = vand.u32 %v190, 4294901760
        %449 = vmatpush.msra.mxu0 %v448
        %v450 = vand.u32 %v188, 4294901760
        %451 = vmatpush.msra.mxu0 %v450
        %v452 = vand.u32 %v186, 4294901760
        %453 = vmatpush.msra.mxu0 %v452
        %v454 = vand.u32 %v184, 4294901760
        %455 = vmatpush.msra.mxu0 %v454
        %v456 = vand.u32 %v182, 4294901760
        %457 = vmatpush.msra.mxu0 %v456
        %v458 = vand.u32 %v180, 4294901760
        %459 = vmatpush.msra.mxu0 %v458
        %v460 = vand.u32 %v197, 4294901760
        %v461 = vsub.f32 %v197, %v460
        %v462 = vand.u32 %v461, 4294901760
        %v463 = vsub.f32 %v461, %v462
        %v464 = vand.u32 %v463, 4294901760
        %465 = vmatmul.f32.gmra.mxu0 %v464
        %v466 = vpop.f32.mrf.mxu0
        %v467 = vadd.f32 0.0, %v466
        %468 = vdwg.mxu0
        %469 = vmatpush.msra.mxu0 0.0
        %470 = vmatpush.msra.mxu0 0.0
        %471 = vmatpush.msra.mxu0 0.0
        %472 = vmatpush.msra.mxu0 0.0
        %473 = vmatpush.msra.mxu0 0.0
        %474 = vmatpush.msra.mxu0 0.0
        %475 = vmatpush.msra.mxu0 0.0
        %476 = vmatpush.msra.mxu0 0.0
        %v477 = vand.u32 %v194, 4294901760
        %v478 = vsub.f32 %v194, %v477
        %v479 = vand.u32 %v478, 4294901760
        %v480 = vsub.f32 %v478, %v479
        %v481 = vand.u32 %v480, 4294901760
        %482 = vmatpush.msra.mxu0 %v481
        %v483 = vand.u32 %v192, 4294901760
        %v484 = vsub.f32 %v192, %v483
        %v485 = vand.u32 %v484, 4294901760
        %v486 = vsub.f32 %v484, %v485
        %v487 = vand.u32 %v486, 4294901760
        %488 = vmatpush.msra.mxu0 %v487
        %v489 = vand.u32 %v190, 4294901760
        %v490 = vsub.f32 %v190, %v489
        %v491 = vand.u32 %v490, 4294901760
        %v492 = vsub.f32 %v490, %v491
        %v493 = vand.u32 %v492, 4294901760
        %494 = vmatpush.msra.mxu0 %v493
        %v495 = vand.u32 %v188, 4294901760
        %v496 = vsub.f32 %v188, %v495
        %v497 = vand.u32 %v496, 4294901760
        %v498 = vsub.f32 %v496, %v497
        %v499 = vand.u32 %v498, 4294901760
        %500 = vmatpush.msra.mxu0 %v499
        %v501 = vand.u32 %v186, 4294901760
        %v502 = vsub.f32 %v186, %v501
        %v503 = vand.u32 %v502, 4294901760
        %v504 = vsub.f32 %v502, %v503
        %v505 = vand.u32 %v504, 4294901760
        %506 = vmatpush.msra.mxu0 %v505
        %v507 = vand.u32 %v184, 4294901760
        %v508 = vsub.f32 %v184, %v507
        %v509 = vand.u32 %v508, 4294901760
        %v510 = vsub.f32 %v508, %v509
        %v511 = vand.u32 %v510, 4294901760
        %512 = vmatpush.msra.mxu0 %v511
        %v513 = vand.u32 %v182, 4294901760
        %v514 = vsub.f32 %v182, %v513
        %v515 = vand.u32 %v514, 4294901760
        %v516 = vsub.f32 %v514, %v515
        %v517 = vand.u32 %v516, 4294901760
        %518 = vmatpush.msra.mxu0 %v517
        %v519 = vand.u32 %v180, 4294901760
        %v520 = vsub.f32 %v180, %v519
        %v521 = vand.u32 %v520, 4294901760
        %v522 = vsub.f32 %v520, %v521
        %v523 = vand.u32 %v522, 4294901760
        %524 = vmatpush.msra.mxu0 %v523
        %v525 = vand.u32 %v197, 4294901760
        %526 = vmatmul.f32.gmra.mxu0 %v525
        %v527 = vpop.f32.mrf.mxu0
        %v528 = vadd.f32 %v467, %v527
        %529 = vdwg.mxu0
        %530 = vmatpush.msra.mxu0 0.0
        %531 = vmatpush.msra.mxu0 0.0
        %532 = vmatpush.msra.mxu0 0.0
        %533 = vmatpush.msra.mxu0 0.0
        %534 = vmatpush.msra.mxu0 0.0
        %535 = vmatpush.msra.mxu0 0.0
        %536 = vmatpush.msra.mxu0 0.0
        %537 = vmatpush.msra.mxu0 0.0
        %v538 = vand.u32 %v194, 4294901760
        %v539 = vsub.f32 %v194, %v538
        %540 = vmatpush.msra.mxu0 %v539
        %v541 = vand.u32 %v192, 4294901760
        %v542 = vsub.f32 %v192, %v541
        %543 = vmatpush.msra.mxu0 %v542
        %v544 = vand.u32 %v190, 4294901760
        %v545 = vsub.f32 %v190, %v544
        %546 = vmatpush.msra.mxu0 %v545
        %v547 = vand.u32 %v188, 4294901760
        %v548 = vsub.f32 %v188, %v547
        %549 = vmatpush.msra.mxu0 %v548
        %v550 = vand.u32 %v186, 4294901760
        %v551 = vsub.f32 %v186, %v550
        %552 = vmatpush.msra.mxu0 %v551
        %v553 = vand.u32 %v184, 4294901760
        %v554 = vsub.f32 %v184, %v553
        %555 = vmatpush.msra.mxu0 %v554
        %v556 = vand.u32 %v182, 4294901760
        %v557 = vsub.f32 %v182, %v556
        %558 = vmatpush.msra.mxu0 %v557
        %v559 = vand.u32 %v180, 4294901760
        %v560 = vsub.f32 %v180, %v559
        %561 = vmatpush.msra.mxu0 %v560
        %v562 = vand.u32 %v197, 4294901760
        %v563 = vsub.f32 %v197, %v562
        %564 = vmatmul.f32.gmra.mxu0 %v563
        %v565 = vpop.f32.mrf.mxu0
        %v566 = vadd.f32 %v528, %v565
        %567 = vdwg.mxu0
        %568 = vmatpush.msra.mxu0 0.0
        %569 = vmatpush.msra.mxu0 0.0
        %570 = vmatpush.msra.mxu0 0.0
        %571 = vmatpush.msra.mxu0 0.0
        %572 = vmatpush.msra.mxu0 0.0
        %573 = vmatpush.msra.mxu0 0.0
        %574 = vmatpush.msra.mxu0 0.0
        %575 = vmatpush.msra.mxu0 0.0
        %v576 = vand.u32 %v194, 4294901760
        %577 = vmatpush.msra.mxu0 %v576
        %v578 = vand.u32 %v192, 4294901760
        %579 = vmatpush.msra.mxu0 %v578
        %v580 = vand.u32 %v190, 4294901760
        %581 = vmatpush.msra.mxu0 %v580
        %v582 = vand.u32 %v188, 4294901760
        %583 = vmatpush.msra.mxu0 %v582
        %v584 = vand.u32 %v186, 4294901760
        %585 = vmatpush.msra.mxu0 %v584
        %v586 = vand.u32 %v184, 4294901760
        %587 = vmatpush.msra.mxu0 %v586
        %v588 = vand.u32 %v182, 4294901760
        %589 = vmatpush.msra.mxu0 %v588
        %v590 = vand.u32 %v180, 4294901760
        %591 = vmatpush.msra.mxu0 %v590
        %v592 = vand.u32 %v197, 4294901760
        %v593 = vsub.f32 %v197, %v592
        %v594 = vand.u32 %v593, 4294901760
        %595 = vmatmul.f32.gmra.mxu0 %v594
        %v596 = vpop.f32.mrf.mxu0
        %v597 = vadd.f32 %v566, %v596
        %598 = vdwg.mxu0
        %599 = vmatpush.msra.mxu0 0.0
        %600 = vmatpush.msra.mxu0 0.0
        %601 = vmatpush.msra.mxu0 0.0
        %602 = vmatpush.msra.mxu0 0.0
        %603 = vmatpush.msra.mxu0 0.0
        %604 = vmatpush.msra.mxu0 0.0
        %605 = vmatpush.msra.mxu0 0.0
        %606 = vmatpush.msra.mxu0 0.0
        %v607 = vand.u32 %v194, 4294901760
        %v608 = vsub.f32 %v194, %v607
        %v609 = vand.u32 %v608, 4294901760
        %610 = vmatpush.msra.mxu0 %v609
        %v611 = vand.u32 %v192, 4294901760
        %v612 = vsub.f32 %v192, %v611
        %v613 = vand.u32 %v612, 4294901760
        %614 = vmatpush.msra.mxu0 %v613
        %v615 = vand.u32 %v190, 4294901760
        %v616 = vsub.f32 %v190, %v615
        %v617 = vand.u32 %v616, 4294901760
        %618 = vmatpush.msra.mxu0 %v617
        %v619 = vand.u32 %v188, 4294901760
        %v620 = vsub.f32 %v188, %v619
        %v621 = vand.u32 %v620, 4294901760
        %622 = vmatpush.msra.mxu0 %v621
        %v623 = vand.u32 %v186, 4294901760
        %v624 = vsub.f32 %v186, %v623
        %v625 = vand.u32 %v624, 4294901760
        %626 = vmatpush.msra.mxu0 %v625
        %v627 = vand.u32 %v184, 4294901760
        %v628 = vsub.f32 %v184, %v627
        %v629 = vand.u32 %v628, 4294901760
        %630 = vmatpush.msra.mxu0 %v629
        %v631 = vand.u32 %v182, 4294901760
        %v632 = vsub.f32 %v182, %v631
        %v633 = vand.u32 %v632, 4294901760
        %634 = vmatpush.msra.mxu0 %v633
        %v635 = vand.u32 %v180, 4294901760
        %v636 = vsub.f32 %v180, %v635
        %v637 = vand.u32 %v636, 4294901760
        %638 = vmatpush.msra.mxu0 %v637
        %v639 = vand.u32 %v197, 4294901760
        %640 = vmatmul.f32.gmra.mxu0 %v639
        %v641 = vpop.f32.mrf.mxu0
        %v642 = vadd.f32 %v597, %v641
        %643 = vdwg.mxu0
        %644 = vmatpush.msra.mxu0 0.0
        %645 = vmatpush.msra.mxu0 0.0
        %646 = vmatpush.msra.mxu0 0.0
        %647 = vmatpush.msra.mxu0 0.0
        %648 = vmatpush.msra.mxu0 0.0
        %649 = vmatpush.msra.mxu0 0.0
        %650 = vmatpush.msra.mxu0 0.0
        %651 = vmatpush.msra.mxu0 0.0
        %v652 = vand.u32 %v194, 4294901760
        %653 = vmatpush.msra.mxu0 %v652
        %v654 = vand.u32 %v192, 4294901760
        %655 = vmatpush.msra.mxu0 %v654
        %v656 = vand.u32 %v190, 4294901760
        %657 = vmatpush.msra.mxu0 %v656
        %v658 = vand.u32 %v188, 4294901760
        %659 = vmatpush.msra.mxu0 %v658
        %v660 = vand.u32 %v186, 4294901760
        %661 = vmatpush.msra.mxu0 %v660
        %v662 = vand.u32 %v184, 4294901760
        %663 = vmatpush.msra.mxu0 %v662
        %v664 = vand.u32 %v182, 4294901760
        %665 = vmatpush.msra.mxu0 %v664
        %v666 = vand.u32 %v180, 4294901760
        %667 = vmatpush.msra.mxu0 %v666
        %v668 = vand.u32 %v197, 4294901760
        %669 = vmatmul.f32.gmra.mxu0 %v668
        %v670 = vpop.f32.mrf.mxu0
        %v671 = vadd.f32 %v642, %v670
        %672 = vdwg.mxu0
        %673 = vst [vmem:[%s177] sm:$0xff] %v434
        %674 = vst [vmem:[%s177 + $0x8] sm:$0xff] %v671
        %s675 = sand.u32 %s75, 1
        %s676 = scalar_lea.sflag [#allocation4], %s675
        %s677 = sand.u32 %s75, 1
        %s678 = smul.addr %s677, 16
        %s679 = scalar_lea.vmem [#allocation7], %s678
        // Predicated region
        $region37: #{tpu_custom_call.1} parent=27 // pred_check
          %p680 = pneg %p85
        $region38: #{tpu_custom_call.1} parent=27 // pred_check_branch
          %682 = sbr.rel (%p680) target = $region40
        $region39: #{tpu_custom_call.1} parent=27 // pred_region
          %684 = vsyncadd %s676, 0
          %s685 = smul.addr %s20, 2
          %s686 = smul.addr %s685, 8
          %s687 = scalar_lea.hbm %s2, %s686
          %s689 = sshll.u32 %s679, 4
          %s690 = int_to_ptr.vmem [resolvable:$true] %s689
          %s691 = sshll.u32 %s687, 4
          %s692 = int_to_ptr.hbm [resolvable:$true] %s691
          %694 = dma.vmem_to_hbm [thread:$0]  %s690, 256, %s692, %s676
        $region40: #{tpu_custom_call.1} parent=27 // pred_fallthru
          _
      $region28: #{tpu_custom_call.1} parent=5 // pred_fallthru
        _
      %p695 = scmp.le.s32.totalorder 2, %s15
      // Predicated region
      $region41: #{tpu_custom_call.1} parent=5 // pred_check
        %p696 = pneg %p695
      $region42: #{tpu_custom_call.1} parent=5 // pred_check_branch
        %698 = sbr.rel (%p696) target = $region44
      $region43: #{tpu_custom_call.1} parent=5 // pred_region
        %s699 = ssub.s32 %s15, 2
        // Predicated region
        $region45: #{tpu_custom_call.1} parent=43 // pred_check
          %p700 = pneg %p91
        $region46: #{tpu_custom_call.1} parent=43 // pred_check_branch
          %702 = sbr.rel (%p700) target = $region48
        $region47: #{tpu_custom_call.1} parent=43 // pred_region
          %s703 = sand.u32 %s76, 1
          %s704 = scalar_lea.sflag [#allocation4], %s703
          %s705 = sand.u32 %s76, 1
          %s706 = smul.addr %s705, 16
          %s707 = scalar_lea.vmem [#allocation7], %s706
          %709 = dma.done %s704, 256
        $region48: #{tpu_custom_call.1} parent=43 // pred_fallthru
          _
      $region44: #{tpu_custom_call.1} parent=5 // pred_fallthru
        _
    $region6: #{tpu_custom_call.1} parent=1 // loop_footer
      %s19 = sadd.s32 1, %s15
    $region7: #{tpu_custom_call.1} parent=1 // loop_footer_branch
      %14 = sbr.rel target = $region3
    $region8: #{tpu_custom_call.1} parent=1 // loop_exit
      _
    %710 = vsyncpa [#allocation3], 1
    %s711 = scalar_lea.sflag [#allocation3], 1
    %712 = vsyncpa %s711, 1
    %713 = vsyncpa [#allocation6], 1
    %714 = vsyncpa [#allocation4], 1
    %s715 = scalar_lea.sflag [#allocation4], 1
    %716 = vsyncpa %s715, 1

</llo_original>
